<compile_context>
chip_gen: v6e
topology: v6e:2x2x1
jax: 0.10.0
libtpu: 0.0.40
codegen_flags: <defaults>
</compile_context>

<pallas_src>
import jax
import jax.numpy as jnp
from jax.experimental import pallas as pl
from jax.experimental.pallas import tpu as pltpu


def _round_up(x, m):
    return ((x + m - 1) // m) * m


def linear_kernel(x_ref, w_ref, b_ref, o_ref):
    # x_ref: (TB, width) f32    w_ref: (width, Npad) bf16
    # b_ref: (1, Npad)   f32    o_ref: (TB, Npad)    f32
    # Cast x to bf16 inside the kernel: x traffic stays 4 B/elem (single HBM
    # read), the convert rides the VPU and is hidden under the DMA.
    x_bf = x_ref[...].astype(jnp.bfloat16)
    acc = jnp.dot(x_bf, w_ref[...], preferred_element_type=jnp.float32)
    o_ref[...] = acc + b_ref[...]


def prepare_params(w_t, b, *, lane_pad=128):
    """Build lane-dense padded bf16 W and f32 bias ONCE (hoisted off the hot path).

    w_t: (width, out_dim) f32, b: (1, out_dim) f32.
    """
    width, out_dim = w_t.shape
    n_pad = _round_up(out_dim, lane_pad)          # 10 -> 128 (unmasked stores)
    w_p = jnp.zeros((width, n_pad), jnp.bfloat16).at[:, :out_dim].set(
        w_t.astype(jnp.bfloat16))
    b_p = jnp.zeros((1, n_pad), jnp.float32).at[:, :out_dim].set(b)
    return w_p, b_p, out_dim


def _choose_tile_batch(B, tile_batch):
    # Small batch: a single full-extent block (block == full dim is always
    # layout-legal, even when B is not a multiple of 8).
    if B <= 512:
        return B
    # Large batch: tile, keep the sublane dim a multiple of 8, and make sure
    # the grid has >= 2 steps so the "parallel" axis feeds both v7x TCs.
    tb = min(tile_batch, -(-B // 2))              # ceil(B / 2)
    return max(8, (tb // 8) * 8)


def linear_model_mnist(x, w_p, b_p, out_dim, *, tile_batch=2048):
    """x: (B, width) f32; w_p/b_p from prepare_params -> (B, out_dim) f32 logits."""
    B, width = x.shape
    n_pad = w_p.shape[1]

    TB = _choose_tile_batch(B, tile_batch)
    grid = (pl.cdiv(B, TB),)                      # ragged last block handled by Pallas

    # VMEM budget: double-buffered x and out tiles + resident W/bias + headroom.
    vmem_need = (2 * TB * width * 4 + 2 * TB * n_pad * 4
                 + width * n_pad * 2 + n_pad * 4)
    vmem_limit = int(min(max(vmem_need + (4 << 20), 16 << 20), 48 << 20))

    cost = pl.CostEstimate(
        flops=2 * B * width * n_pad,
        transcendentals=0,
        bytes_accessed=(B * width * 4 + w_p.size * 2 + b_p.size * 4
                        + B * n_pad * 4),
    )

    out = pl.pallas_call(
        linear_kernel,
        out_shape=jax.ShapeDtypeStruct((B, n_pad), jnp.float32),
        grid_spec=pl.GridSpec(
            grid=grid,
            in_specs=[
                pl.BlockSpec((TB, width), lambda i: (i, 0)),    # x: tiled over batch
                pl.BlockSpec((width, n_pad), lambda i: (0, 0)),  # W: resident in VMEM
                pl.BlockSpec((1, n_pad), lambda i: (0, 0)),      # b: resident in VMEM
            ],
            out_specs=pl.BlockSpec((TB, n_pad), lambda i: (i, 0)),
        ),
        compiler_params=pltpu.CompilerParams(
            dimension_semantics=("parallel",),    # both TCs on v7x; no-op on v5e/v6e
            vmem_limit_bytes=vmem_limit),
        cost_estimate=cost,
    )(x, w_p, b_p)

    # TODO(synk): if a consumer (softmax / argmax / loss) is ever fused into the
    # kernel, drop this lane slice so the padded logits never round-trip HBM.
    return out[:, :out_dim]


def init_params(key, width, out_dim=10):
    # Xavier-uniform weight (fan_in=width, fan_out=out_dim), zero bias —
    # matches nn.init.xavier_uniform_ / nn.init.zeros_ in the PyTorch module.
    bound = jnp.sqrt(6.0 / (width + out_dim))
    w = jax.random.uniform(key, (out_dim, width), jnp.float32,
                           minval=-bound, maxval=bound)   # PyTorch layout (10, width)
    w_t = w.T                                             # (width, 10) for the kernel
    b = jnp.zeros((1, out_dim), jnp.float32)
    return w_t, b


if __name__ == "__main__":
    key = jax.random.PRNGKey(0)
    k_x, k_w = jax.random.split(key)

    batch, width = 8, 32
    x = jax.random.normal(k_x, (batch, width), jnp.float32)
    w_t, b = init_params(k_w, width)

    # Padded/cast params are built once, outside the per-call hot path.
    w_p, b_p, out_dim = prepare_params(w_t, b)

    out = linear_model_mnist(x, w_p, b_p, out_dim)
    jax.block_until_ready(out)

    # Reference 1: same bf16-rounded operands, f32 accumulate (matches kernel math).
    ref_bf = (x.astype(jnp.bfloat16).astype(jnp.float32)
              @ w_t.astype(jnp.bfloat16).astype(jnp.float32)) + b
    # Reference 2: the PyTorch-equivalent f32 linear layer.
    ref_f32 = x @ w_t + b

    assert out.shape == (batch, 10)
    assert jnp.allclose(out, ref_bf, atol=1e-4), "mismatch vs bf16 reference"
    assert jnp.allclose(out, ref_f32, atol=2e-2, rtol=2e-2), "mismatch vs f32 reference"

    print("KERNEL_OK")
</pallas_src>

<mosaic_0001>
module attributes {stable_mosaic.version = 11 : i64} {
  func.func @linear_kernel(%arg0: i32, %arg1: memref<8x32xf32, #tpu.memory_space<vmem>>, %arg2: memref<32x128xbf16, #tpu.memory_space<vmem>>, %arg3: memref<1x128xf32, #tpu.memory_space<vmem>>, %arg4: memref<8x128xf32, #tpu.memory_space<vmem>>) attributes {dimension_semantics = [#tpu.dimension_semantics<parallel>], iteration_bounds = array<i64: 1>, scalar_prefetch = 0 : i64, scratch_operands = 0 : i64, tpu.core_type = #tpu.core_type<tc>, window_params = [{transform_indices = @transform_0, window_bounds = array<i64: 8, 32>}, {pipeline_mode = #tpu.pipeline_mode<synchronous>, transform_indices = @transform_1, window_bounds = array<i64: 32, 128>}, {pipeline_mode = #tpu.pipeline_mode<synchronous>, transform_indices = @transform_2, window_bounds = array<i64: 1, 128>}, {transform_indices = @transform_3, window_bounds = array<i64: 8, 128>}]} {
    %c0 = arith.constant 0 : index
    %c0_0 = arith.constant 0 : index
    %0 = vector.load %arg1[%c0, %c0_0] : memref<8x32xf32, #tpu.memory_space<vmem>>, vector<8x32xf32>
    %1 = arith.truncf %0 : vector<8x32xf32> to vector<8x32xbf16>
    %c0_1 = arith.constant 0 : index
    %c0_2 = arith.constant 0 : index
    %2 = vector.load %arg2[%c0_1, %c0_2] : memref<32x128xbf16, #tpu.memory_space<vmem>>, vector<32x128xbf16>
    %cst = arith.constant dense<0.000000e+00> : vector<8x128xf32>
    %3 = tpu.matmul %1, %2, %cst {dimension_numbers = #tpu.dot_dimension_numbers<[1], [0], [0], [1], [0, 0, 1, 1], [], []>} : vector<8x32xbf16>, vector<32x128xbf16>, vector<8x128xf32> -> vector<8x128xf32>
    %c0_3 = arith.constant 0 : index
    %c0_4 = arith.constant 0 : index
    %4 = vector.load %arg3[%c0_3, %c0_4] : memref<1x128xf32, #tpu.memory_space<vmem>>, vector<1x128xf32>
    %5 = vector.broadcast %4 : vector<1x128xf32> to vector<8x128xf32>
    %6 = arith.addf %3, %5 : vector<8x128xf32>
    %c0_5 = arith.constant 0 : index
    %c0_6 = arith.constant 0 : index
    %7 = vector.load %arg4[%c0_5, %c0_6] : memref<8x128xf32, #tpu.memory_space<vmem>>, vector<8x128xf32>
    tpu.vector_store %arg4[%c0_5, %c0_6], %6 {strides = array<i32>} : memref<8x128xf32, #tpu.memory_space<vmem>>, vector<8x128xf32>,
    return
  }
  func.func @transform_0(%arg0: i32) -> (i32, i32) {
    %c0_i32 = arith.constant 0 : i32
    %c0_i32_0 = arith.constant 0 : i32
    return %arg0, %c0_i32 : i32, i32
  }
  func.func @transform_1(%arg0: i32) -> (i32, i32) {
    %c0_i32 = arith.constant 0 : i32
    %c0_i32_0 = arith.constant 0 : i32
    %c0_i32_1 = arith.constant 0 : i32
    return %c0_i32, %c0_i32_0 : i32, i32
  }
  func.func @transform_2(%arg0: i32) -> (i32, i32) {
    %c0_i32 = arith.constant 0 : i32
    %c0_i32_0 = arith.constant 0 : i32
    %c0_i32_1 = arith.constant 0 : i32
    return %c0_i32, %c0_i32_0 : i32, i32
  }
  func.func @transform_3(%arg0: i32) -> (i32, i32) {
    %c0_i32 = arith.constant 0 : i32
    %c0_i32_0 = arith.constant 0 : i32
    return %arg0, %c0_i32 : i32, i32
  }
}

</mosaic_0001>

<llo_original>
// kernel: tpu_custom_call.1
$region0: #{tpu_custom_call.1}
  #allocation0 [shape = 'u32[]', space=smem, size = 0x4, offset = 0x4, fixed_abs, tag = 'smem constant byte address 0x4 - core index']
  #allocation1 [shape = 'u32[144,128]{1,0:T(1,128)}', space=vmem, size = 0x12000, scoped, tag = 'internal scratch']
  %s0 = inlined_call_operand.hbm [shape: f32[8,32], index: 0, kind: input, shape index: {}]
  %s1 = inlined_call_operand.hbm [shape: bf16[32,128], index: 1, kind: input, shape index: {}]
  %s2 = inlined_call_operand.vmem [shape: f32[1,128], index: 2, kind: input, shape index: {}]
  %s3 = inlined_call_operand.hbm [shape: f32[8,128], index: 3, kind: output, shape index: {}]
  %s4 = sld [smem:[#allocation0]]
  $region30: #{tpu_custom_call.1} parent=0
    _
  %s6 = ssub.s32 1, %s4
  %s7 = scalar_select 0, %s6, %s4
  $region1: #{tpu_custom_call.1} parent=0
    #allocation2 [shape = 'u8[4096]{0}', space=vmem, size = 0x1000, scoped, tag = 'input window, operand 0, single buffered']
    #allocation3 [shape = 's32[1]{0}', space=sflag, size = 0x4, scoped, tag = 'scoped memory for tpu_custom_call.1']
    #allocation4 [shape = 's32[1]{0}', space=sflag, size = 0x4, scoped, tag = 'scoped memory for tpu_custom_call.1']
    #allocation5 [shape = 'u8[8192]{0}', space=vmem, size = 0x2000, scoped, tag = 'input window, operand 1, single buffered']
    #allocation6 [shape = 's32[1]{0}', space=sflag, size = 0x4, scoped, tag = 'scoped memory for tpu_custom_call.1']
    #allocation7 [shape = 'u8[4096]{0}', space=vmem, size = 0x1000, scoped, tag = 'output window, operand 0, single buffered']
    %8 = vsyncpa [#allocation3], 0
    %9 = vsyncpa [#allocation6], 0
    %10 = vsyncpa [#allocation4], 0
    // Predicated region
    $region2: #{tpu_custom_call.1} parent=1 // pred_check
      _
    $region3: #{tpu_custom_call.1} parent=1 // pred_check_branch
      %12 = sbr.rel (0) target = $region5
    $region4: #{tpu_custom_call.1} parent=1 // pred_region
      %s14 = ssub.s32 128, 128
      %15 = vsyncadd [#allocation3], %s14
      %s17 = sshll.u32 [#allocation2], 4
      %s18 = int_to_ptr.vmem [resolvable:$true] %s17
      %20 = dma.hbm_to_vmem [thread:$0]  %s0, 128, %s18, [#allocation3]
    $region5: #{tpu_custom_call.1} parent=1 // pred_fallthru
      _
    // Predicated region
    $region6: #{tpu_custom_call.1} parent=1 // pred_check
      _
    $region7: #{tpu_custom_call.1} parent=1 // pred_check_branch
      %22 = sbr.rel (0) target = $region9
    $region8: #{tpu_custom_call.1} parent=1 // pred_region
      %s24 = ssub.s32 256, 256
      %25 = vsyncadd [#allocation6], %s24
      %s26 = sshll.u32 [#allocation5], 4
      %s27 = int_to_ptr.vmem [resolvable:$true] %s26
      %32 = dma.hbm_to_vmem [thread:$0]  %s1, 256, %s27, [#allocation6], 64, 64, 4
    $region9: #{tpu_custom_call.1} parent=1 // pred_fallthru
      _
    // Predicated region
    $region10: #{tpu_custom_call.1} parent=1 // pred_check
      _
    $region11: #{tpu_custom_call.1} parent=1 // pred_check_branch
      %34 = sbr.rel (0) target = $region13
    $region12: #{tpu_custom_call.1} parent=1 // pred_region
      _
    $region13: #{tpu_custom_call.1} parent=1 // pred_fallthru
      _
    // Predicated region
    $region14: #{tpu_custom_call.1} parent=1 // pred_check
      _
    $region15: #{tpu_custom_call.1} parent=1 // pred_check_branch
      %36 = sbr.rel (0) target = $region17
    $region16: #{tpu_custom_call.1} parent=1 // pred_region
      %37 = dma.done [#allocation3], 128
    $region17: #{tpu_custom_call.1} parent=1 // pred_fallthru
      _
    // Predicated region
    $region18: #{tpu_custom_call.1} parent=1 // pred_check
      _
    $region19: #{tpu_custom_call.1} parent=1 // pred_check_branch
      %39 = sbr.rel (0) target = $region21
    $region20: #{tpu_custom_call.1} parent=1 // pred_region
      %40 = dma.done [#allocation6], 256
    $region21: #{tpu_custom_call.1} parent=1 // pred_fallthru
      _
    %v42 = vld [vmem:[#allocation2] sm:$0xff]
    %v43 = vpack.c.bf16 %v42, %v42
    %v44 = vld [vmem:[#allocation5] sm:$0xf]
    %v45 = vld [vmem:[#allocation5 + $0x4] sm:$0xf]
    %v46 = vld [vmem:[#allocation5 + $0x8] sm:$0xf]
    %v47 = vld [vmem:[#allocation5 + $0xc] sm:$0xf]
    %v48 = vld [vmem:[%s2] sm:$0x1]
    %v50 = vlaneseq
    %v51 = vshrl.u32 %v50, 7
    %v52 = vsub.s32 0, %v51
    %v53 = vrot.slane %v48, %v52
    %v59 = vunpack.c.l.b16 %v44
    %v60 = vunpack.c.l.b16 %v45
    %v61 = vunpack.c.l.b16 %v46
    %v62 = vunpack.c.l.b16 %v47
    %v63 = vpack.c.b16 %v60, %v59
    %v64 = vpack.c.b16 %v62, %v61
    %vm67 = vcmask 261120
    %v69 = vsel %vm67, %v43, 0
    %71 = vmatprep.subr.bf16.mxu0 0
    %72 = vmatpush1.bf16.msra.mxu0 0
    %73 = vmatprep.subr.bf16.mxu0 0
    %74 = vmatpush1.bf16.msra.mxu0 0
    %75 = vmatprep.subr.bf16.mxu0 0
    %76 = vmatpush1.bf16.msra.mxu0 0
    %77 = vmatprep.subr.bf16.mxu0 0
    %78 = vmatpush1.bf16.msra.mxu0 0
    %79 = vmatprep.subr.bf16.mxu0 0
    %80 = vmatpush1.bf16.msra.mxu0 0
    %81 = vmatprep.subr.bf16.mxu0 0
    %82 = vmatpush1.bf16.msra.mxu0 0
    %83 = vmatprep.subr.bf16.mxu0 0
    %84 = vmatpush1.bf16.msra.mxu0 %v64
    %85 = vmatprep.subr.bf16.mxu0 0
    %86 = vmatpush1.bf16.msra.mxu0 %v63
    %87 = vmatprep.subr.bf16.mxu0 0
    %88 = vmatpush2.bf16.msra.mxu0 0
    %89 = vmatprep.subr.bf16.mxu0 0
    %90 = vmatpush2.bf16.msra.mxu0 0
    %91 = vmatprep.subr.bf16.mxu0 0
    %92 = vmatpush2.bf16.msra.mxu0 0
    %93 = vmatprep.subr.bf16.mxu0 0
    %94 = vmatpush2.bf16.msra.mxu0 0
    %95 = vmatprep.subr.bf16.mxu0 0
    %96 = vmatpush2.bf16.msra.mxu0 0
    %97 = vmatprep.subr.bf16.mxu0 0
    %98 = vmatpush2.bf16.msra.mxu0 0
    %99 = vmatprep.subr.bf16.mxu0 0
    %100 = vmatpush2.bf16.msra.mxu0 0
    %101 = vmatprep.subr.bf16.mxu0 0
    %102 = vmatpush2.bf16.msra.mxu0 0
    %103 = vmatprep.mubr.bf16.mxu0 0
    %104 = vmatmul.mubr.bf16.gmra.mxu0 %v69
    %v105 = vpop.f32.mrf.mxu0
    %v106 = vadd.f32 %v53, %v105
    %v107 = vpop.f32.mrf.mxu0
    %v108 = vpop.f32.mrf.mxu0
    %v109 = vpop.f32.mrf.mxu0
    %110 = vdwg.mxu0
    %111 = vst [vmem:[#allocation7] sm:$0xff] %v106
    // Predicated region
    $region22: #{tpu_custom_call.1} parent=1 // pred_check
      _
    $region23: #{tpu_custom_call.1} parent=1 // pred_check_branch
      %113 = sbr.rel (0) target = $region25
    $region24: #{tpu_custom_call.1} parent=1 // pred_region
      %s115 = ssub.s32 128, 128
      %116 = vsyncadd [#allocation4], %s115
      %s118 = sshll.u32 [#allocation7], 4
      %s119 = int_to_ptr.vmem [resolvable:$true] %s118
      %121 = dma.vmem_to_hbm [thread:$0]  %s119, 128, %s3, [#allocation4]
    $region25: #{tpu_custom_call.1} parent=1 // pred_fallthru
      _
    // Predicated region
    $region26: #{tpu_custom_call.1} parent=1 // pred_check
      _
    $region27: #{tpu_custom_call.1} parent=1 // pred_check_branch
      %123 = sbr.rel (0) target = $region29
    $region28: #{tpu_custom_call.1} parent=1 // pred_region
      %124 = dma.done [#allocation4], 128
    $region29: #{tpu_custom_call.1} parent=1 // pred_fallthru
      _
    %125 = vsyncpa [#allocation3], 1
    %126 = vsyncpa [#allocation6], 1
    %127 = vsyncpa [#allocation4], 1

</llo_original>
